<compile_context>
chip_gen: v6e
topology: v6e:2x2x1
jax: 0.10.0
libtpu: 0.0.40
codegen_flags: <defaults>
</compile_context>

<pallas_src>
import functools
import numpy as np

import jax
import jax.numpy as jnp
from jax.experimental import pallas as pl
from jax.experimental.pallas import tpu as pltpu


def _round_up(v, m):
    return ((v + m - 1) // m) * m


# ----------------------------------------------------------------------------
# Fused kernel: 1x1 conv head (MXU) + per-anchor decode, one body for all
# scales.  Per-tile scalars come from the SMEM meta table (scalar prefetch).
#   meta_ref : (n_tiles*NI,) int32 SMEM  [sid, p_off, hw, grid_w, m_valid, 2t]
#   x_ref    : (Cin, TILE)      features; channels on sublanes, pixels on lanes
#   w_ref    : (1, Cout_pad, Cin)  this tile's scale head weights (reordered)
#   b_ref    : (1, Cout_pad, 1)    bias (log-anchors folded into tw/th rows)
#   o_ref    : (24, TILE)  rows: 0 n | 1:4 conf | 4:7 cx | 7:10 cy | 10:13 w
#                                | 13:16 h | 16:19 cls | 19:22 valid | 22:24 pad
# ----------------------------------------------------------------------------
def fused_head_decode_kernel(meta_ref, x_ref, w_ref, b_ref, o_ref, *,
                             tile, thresh, num_cls, ni):
    i = pl.program_id(0)
    base = i * ni
    p_off = meta_ref[base + 1]
    hw = meta_ref[base + 2]
    grid_w = meta_ref[base + 3]
    m_valid = meta_ref[base + 4]
    t_x2 = meta_ref[base + 5]

    x = x_ref[...]                      # (Cin, tile)
    w_mat = w_ref[0]                    # (Cout_pad, Cin)
    bias = b_ref[0]                     # (Cout_pad, 1)

    # 1x1-conv head: one MXU matmul (f32 accumulate) + lane-broadcast bias add.
    head = jnp.dot(w_mat, x, preferred_element_type=jnp.float32) + bias

    # Flattened pixel index -> (n, gy, gx).  f32 divide with +0.5 guard is
    # exact for p < ~2^22 and avoids the long int32-division VALU sequence.
    lane = jax.lax.broadcasted_iota(jnp.int32, (1, tile), 1)
    p = p_off + lane                                     # (1, tile) int32
    n_i = ((p.astype(jnp.float32) + 0.5) / hw).astype(jnp.int32)
    rem = p - n_i * hw
    gy_i = ((rem.astype(jnp.float32) + 0.5) / grid_w).astype(jnp.int32)
    gx_i = rem - gy_i * grid_w
    n_row = n_i.astype(jnp.float32)
    gy = gy_i.astype(jnp.float32)
    gx = gx_i.astype(jnp.float32)
    in_range = (p < m_valid).astype(jnp.float32)         # mask padded tail lanes

    # Type-grouped head rows -> whole-block transforms (no per-row slicing):
    #   rows 0:9   sigmoid  [conf a0..a2 | tx a0..a2 | ty a0..a2]
    #   rows 9:15  exp      [tw a0..a2 | th a0..a2]  (log anchors folded in bias)
    #   rows 15:.. raw      [cls a0 | cls a1 | cls a2]
    sig9 = jax.nn.sigmoid(head[0:9, :])
    conf3 = sig9[0:3, :]
    cx3 = (gx + sig9[3:6, :]) * t_x2 * 0.5               # * t  (t = t_x2 / 2)
    cy3 = (gy + sig9[6:9, :]) * t_x2 * 0.5
    wh6 = jnp.exp(head[9:15, :])                         # [w a0..a2 | h a0..a2]
    valid3 = (conf3 > thresh).astype(jnp.float32) * in_range

    # Per-anchor class argmax (index of first maximum), iota hoisted.
    cidx = jax.lax.broadcasted_iota(jnp.int32, (num_cls, tile), 0)
    cls_rows = []
    for a in range(3):
        cs = head[15 + a * num_cls:15 + (a + 1) * num_cls, :]
        cmax = jnp.max(cs, axis=0, keepdims=True)
        cls_rows.append(jnp.min(jnp.where(cs >= cmax, cidx, num_cls),
                                axis=0, keepdims=True).astype(jnp.float32))
    cls3 = jnp.concatenate(cls_rows, axis=0)             # (3, tile)

    # Single lane-dense (24, tile) store, assembled from 8 multi-row blocks.
    o_ref[...] = jnp.concatenate(
        [n_row, conf3, cx3, cy3, wh6, cls3, valid3,
         jnp.zeros((2, tile), jnp.float32)], axis=0)


# ----------------------------------------------------------------------------
# Device-side forward (jitted): backbone stand-in + one fused pallas_call.
# ----------------------------------------------------------------------------
def avgpool(x_nhwc, f):
    N, H, W, C = x_nhwc.shape
    return x_nhwc.reshape(N, H // f, f, W // f, f, C).mean(axis=(2, 4))


# (anchor key, downsample factor, cell size t) matching the torch forward.
_SCALE_CFG = ((10, 8, 30.0), (20, 4, 15.0), (40, 2, 7.5))


@functools.partial(jax.jit, static_argnums=(2, 3))
def _device_forward(x_nchw, params, thresh, anchors_frozen):
    anchors = dict(anchors_frozen)
    x = jnp.transpose(x_nchw, (0, 2, 3, 1)).astype(jnp.float32)   # NHWC
    Cin = x.shape[-1]

    Cout = params[_SCALE_CFG[0][0]]["w"].shape[1]
    num_cls = Cout // 3 - 5
    v_len = 5 + num_cls
    Cout_pad = _round_up(Cout, 8)

    # Channel permutation: group by field so in-kernel transforms are block-wise
    # [conf x3 | tx x3 | ty x3 | tw x3 | th x3 | cls(a0) | cls(a1) | cls(a2)].
    perm = np.array(
        [a * v_len + k for k in range(5) for a in range(3)]
        + [a * v_len + 5 + c for a in range(3) for c in range(num_cls)],
        dtype=np.int32)

    feats, Ms, infos, w_list, b_list = [], [], [], [], []
    for key, factor, t in _SCALE_CFG:
        xd = avgpool(x, factor)      # TODO(synk): Darknet53 backbone stand-in
        n, h, w, _ = xd.shape
        m = n * h * w
        feats.append(xd.reshape(m, Cin).T)                # (Cin, M)
        Ms.append(m)
        infos.append(dict(hw=h * w, grid_w=w, m_valid=m, t=float(t)))

        # Reorder head rows; fold log(anchor) into the tw/th bias rows so the
        # kernel only needs one exp block:  a*exp(v) == exp(v + log a).
        aw = np.array([anchors[key][a][0] for a in range(3)], np.float64)
        ah = np.array([anchors[key][a][1] for a in range(3)], np.float64)
        fold = np.zeros((Cout,), np.float32)
        fold[9:12] = np.log(aw)
        fold[12:15] = np.log(ah)
        w_r = params[key]["w"].T[perm, :]                 # (Cout, Cin)
        b_r = params[key]["b"][perm] + jnp.asarray(fold)
        w_list.append(jnp.pad(w_r, ((0, Cout_pad - Cout), (0, 0))))
        b_list.append(jnp.pad(b_r, (0, Cout_pad - Cout)).reshape(Cout_pad, 1))

    # Lane tile: 256 keeps vreg pressure comfortable (v5e/v6e single store
    # slot); pad total tile count to an even number for v7x 2-TC balance.
    tile = max(128, min(256, _round_up(max(Ms), 128)))
    mps = [_round_up(m, tile) for m in Ms]
    n_tiles = sum(mp // tile for mp in mps)
    if n_tiles % 2 == 1:
        mps[-1] += tile
        n_tiles += 1

    NI = 6
    meta = np.zeros((n_tiles * NI,), np.int32)
    segs, lane_starts = [], []
    lane_off = tile_off = 0
    for s, (f_t, m, mp, info) in enumerate(zip(feats, Ms, mps, infos)):
        segs.append(jnp.pad(f_t, ((0, 0), (0, mp - m))))
        lane_starts.append(lane_off)
        tc = mp // tile
        for l in range(tc):
            j = (tile_off + l) * NI
            meta[j + 0] = s
            meta[j + 1] = l * tile
            meta[j + 2] = info["hw"]
            meta[j + 3] = info["grid_w"]
            meta[j + 4] = info["m_valid"]
            meta[j + 5] = int(round(2.0 * info["t"]))
        lane_off += mp
        tile_off += tc

    x_all = jnp.concatenate(segs, axis=1)                 # (Cin, Mp_total)
    w_all = jnp.stack(w_list, axis=0)                     # (3, Cout_pad, Cin)
    b_all = jnp.stack(b_list, axis=0)                     # (3, Cout_pad, 1)
    mp_total = lane_off

    kernel = functools.partial(fused_head_decode_kernel, tile=tile,
                               thresh=float(thresh), num_cls=num_cls, ni=NI)

    out = pl.pallas_call(
        kernel,
        out_shape=jax.ShapeDtypeStruct((24, mp_total), jnp.float32),
        grid_spec=pltpu.PrefetchScalarGridSpec(
            num_scalar_prefetch=1,
            grid=(n_tiles,),
            in_specs=[
                pl.BlockSpec((Cin, tile), lambda i, mi: (0, i)),
                pl.BlockSpec((1, Cout_pad, Cin),
                             lambda i, mi: (mi[i * NI + 0], 0, 0)),
                pl.BlockSpec((1, Cout_pad, 1),
                             lambda i, mi: (mi[i * NI + 0], 0, 0)),
            ],
            out_specs=pl.BlockSpec((24, tile), lambda i, mi: (0, i)),
        ),
        compiler_params=pltpu.CompilerParams(
            dimension_semantics=("parallel",)),
    )(jnp.asarray(meta), x_all, w_all, b_all)

    # (24, Mp_total) type-grouped rows -> dense (sum_s M_s*3, 8) rows
    # [n, conf, cx, cy, w, h, cls, valid], pixel-major / anchor-minor, which
    # matches torch's mask.nonzero() over the permuted (N,H,W,3) mask.
    dense = []
    for ls, m in zip(lane_starts, Ms):
        seg = out[:, ls:ls + m]                               # (24, m)
        fields = seg[1:22].reshape(7, 3, m)                   # (field, anchor, pix)
        n_rep = jnp.broadcast_to(seg[0:1].reshape(1, 1, m), (1, 3, m))
        block = jnp.concatenate([n_rep, fields], axis=0)      # (8, 3, m)
        dense.append(block.transpose(2, 1, 0).reshape(m * 3, 8))
    return jnp.concatenate(dense, axis=0)


# ----------------------------------------------------------------------------
# Host glue: boolean gather + greedy NMS (data-dependent shapes -> numpy).
# ----------------------------------------------------------------------------
def _freeze_anchors(anchors):
    return tuple(sorted(
        (int(k), tuple(tuple(float(v) for v in a) for a in al))
        for k, al in anchors.items()))


def _to_xyxy(b):
    x1 = b[..., 2] - b[..., 4] / 2.0
    y1 = b[..., 3] - b[..., 5] / 2.0
    x2 = b[..., 2] + b[..., 4] / 2.0
    y2 = b[..., 3] + b[..., 5] / 2.0
    return x1, y1, x2, y2


def _iou(box, boxes):
    bx1, by1, bx2, by2 = _to_xyxy(box)
    x1, y1, x2, y2 = _to_xyxy(boxes)
    ix1 = np.maximum(bx1, x1); iy1 = np.maximum(by1, y1)
    ix2 = np.minimum(bx2, x2); iy2 = np.minimum(by2, y2)
    inter = np.clip(ix2 - ix1, 0, None) * np.clip(iy2 - iy1, 0, None)
    a_box = (bx2 - bx1) * (by2 - by1)
    a_all = (x2 - x1) * (y2 - y1)
    return inter / np.maximum(a_box + a_all - inter, 1e-9)


def nms(boxes, thresh=0.5, is_min=False):
    # boxes: (K, 7) numpy [n, conf, cx, cy, w, h, cls] — greedy NMS (isMin=False)
    if boxes.shape[0] == 0:
        return np.zeros((0, 7), dtype=np.float32)
    boxes = boxes[np.argsort(-boxes[:, 1])]
    keep = []
    while boxes.shape[0] > 0:
        cur = boxes[0]
        keep.append(cur)
        rest = boxes[1:]
        if rest.shape[0] == 0:
            break
        boxes = rest[_iou(cur, rest) < thresh]
    return np.stack(keep, axis=0)


def detector_forward(x_nchw, thresh, anchors, params):
    dense = _device_forward(x_nchw, params, float(thresh),
                            _freeze_anchors(anchors))
    dense = np.asarray(jax.block_until_ready(dense))   # single host sync
    boxes = dense[dense[:, 7] > 0.5][:, :7]            # _filter boolean gather
    return nms(boxes, 0.5, is_min=False)


if __name__ == "__main__":
    key = jax.random.PRNGKey(0)
    kx, kw1, kb1, kw2, kb2, kw3, kb3 = jax.random.split(key, 7)

    N, Cin, H, W = 2, 4, 32, 32
    num_classes = 5
    Cout = 3 * (5 + num_classes)

    x = jax.random.normal(kx, (N, Cin, H, W), jnp.float32)

    params = {
        10: dict(w=0.2 * jax.random.normal(kw1, (Cin, Cout), jnp.float32),
                 b=0.05 * jax.random.normal(kb1, (Cout,), jnp.float32)),
        20: dict(w=0.2 * jax.random.normal(kw2, (Cin, Cout), jnp.float32),
                 b=0.05 * jax.random.normal(kb2, (Cout,), jnp.float32)),
        40: dict(w=0.2 * jax.random.normal(kw3, (Cin, Cout), jnp.float32),
                 b=0.05 * jax.random.normal(kb3, (Cout,), jnp.float32)),
    }
    anchors = {
        10: [[116.0, 90.0], [156.0, 198.0], [373.0, 326.0]],
        20: [[30.0, 61.0], [62.0, 45.0], [59.0, 119.0]],
        40: [[10.0, 13.0], [16.0, 30.0], [33.0, 23.0]],
    }

    out = detector_forward(x, thresh=0.5, anchors=anchors, params=params)
    assert out.ndim == 2 and out.shape[1] == 7
    print("KERNEL_OK")
</pallas_src>

<mosaic_0001>
module attributes {stable_mosaic.version = 11 : i64} {
  func.func @fused_head_decode_kernel(%arg0: i32, %arg1: memref<24xi32, #tpu.memory_space<smem>>, %arg2: memref<4x256xf32, #tpu.memory_space<vmem>>, %arg3: memref<1x32x4xf32, #tpu.memory_space<vmem>>, %arg4: memref<1x32x1xf32, #tpu.memory_space<vmem>>, %arg5: memref<24x256xf32, #tpu.memory_space<vmem>>) attributes {dimension_semantics = [#tpu.dimension_semantics<parallel>], iteration_bounds = array<i64: 4>, scalar_prefetch = 1 : i64, scratch_operands = 0 : i64, tpu.core_type = #tpu.core_type<tc>, window_params = [{transform_indices = @transform_0, window_bounds = array<i64: 4, 256>}, {transform_indices = @transform_1, window_bounds = array<i64: 1, 32, 4>}, {transform_indices = @transform_2, window_bounds = array<i64: 1, 32, 1>}, {transform_indices = @transform_3, window_bounds = array<i64: 24, 256>}]} {
    %c6_i32 = arith.constant 6 : i32
    %0 = arith.muli %arg0, %c6_i32 : i32
    %c1_i32 = arith.constant 1 : i32
    %1 = arith.addi %0, %c1_i32 : i32
    %2 = arith.index_cast %1 : i32 to index
    %3 = memref.load %arg1[%2] : memref<24xi32, #tpu.memory_space<smem>>
    %c2_i32 = arith.constant 2 : i32
    %4 = arith.addi %0, %c2_i32 : i32
    %5 = arith.index_cast %4 : i32 to index
    %6 = memref.load %arg1[%5] : memref<24xi32, #tpu.memory_space<smem>>
    %c3_i32 = arith.constant 3 : i32
    %7 = arith.addi %0, %c3_i32 : i32
    %8 = arith.index_cast %7 : i32 to index
    %9 = memref.load %arg1[%8] : memref<24xi32, #tpu.memory_space<smem>>
    %c4_i32 = arith.constant 4 : i32
    %10 = arith.addi %0, %c4_i32 : i32
    %11 = arith.index_cast %10 : i32 to index
    %12 = memref.load %arg1[%11] : memref<24xi32, #tpu.memory_space<smem>>
    %c5_i32 = arith.constant 5 : i32
    %13 = arith.addi %0, %c5_i32 : i32
    %14 = arith.index_cast %13 : i32 to index
    %15 = memref.load %arg1[%14] : memref<24xi32, #tpu.memory_space<smem>>
    %c0 = arith.constant 0 : index
    %c0_0 = arith.constant 0 : index
    %16 = vector.load %arg2[%c0, %c0_0] : memref<4x256xf32, #tpu.memory_space<vmem>>, vector<4x256xf32>
    %c0_1 = arith.constant 0 : index
    %c0_2 = arith.constant 0 : index
    %c0_3 = arith.constant 0 : index
    %17 = vector.load %arg3[%c0_1, %c0_2, %c0_3] : memref<1x32x4xf32, #tpu.memory_space<vmem>>, vector<1x32x4xf32>
    %18 = vector.shape_cast %17 : vector<1x32x4xf32> to vector<32x4xf32>
    %c0_4 = arith.constant 0 : index
    %c0_5 = arith.constant 0 : index
    %c0_6 = arith.constant 0 : index
    %19 = vector.load %arg4[%c0_4, %c0_5, %c0_6] : memref<1x32x1xf32, #tpu.memory_space<vmem>>, vector<1x32x1xf32>
    %20 = vector.shape_cast %19 : vector<1x32x1xf32> to vector<32x1xf32>
    %cst = arith.constant dense<0.000000e+00> : vector<32x256xf32>
    %21 = tpu.matmul %18, %16, %cst {dimension_numbers = #tpu.dot_dimension_numbers<[1], [0], [0], [1], [0, 0, 1, 1], [], []>} : vector<32x4xf32>, vector<4x256xf32>, vector<32x256xf32> -> vector<32x256xf32>
    %22 = vector.broadcast %20 : vector<32x1xf32> to vector<32x256xf32>
    %23 = arith.addf %21, %22 : vector<32x256xf32>
    %24 = tpu.iota {dimensions = array<i32: 1>} : vector<1x256xi32>
    %25 = vector.broadcast %3 : i32 to vector<1x256xi32>
    %26 = arith.addi %25, %24 : vector<1x256xi32>
    %27 = arith.sitofp %26 : vector<1x256xi32> to vector<1x256xf32>
    %cst_7 = arith.constant 5.000000e-01 : f32
    %28 = vector.broadcast %cst_7 : f32 to vector<1x256xf32>
    %29 = arith.addf %27, %28 : vector<1x256xf32>
    %30 = arith.sitofp %6 : i32 to f32
    %31 = vector.broadcast %30 : f32 to vector<1x256xf32>
    %32 = arith.divf %29, %31 : vector<1x256xf32>
    %33 = arith.fptosi %32 : vector<1x256xf32> to vector<1x256xi32>
    %34 = vector.broadcast %6 : i32 to vector<1x256xi32>
    %35 = arith.muli %33, %34 : vector<1x256xi32>
    %36 = arith.subi %26, %35 : vector<1x256xi32>
    %37 = arith.sitofp %36 : vector<1x256xi32> to vector<1x256xf32>
    %cst_8 = arith.constant 5.000000e-01 : f32
    %38 = vector.broadcast %cst_8 : f32 to vector<1x256xf32>
    %39 = arith.addf %37, %38 : vector<1x256xf32>
    %40 = arith.sitofp %9 : i32 to f32
    %41 = vector.broadcast %40 : f32 to vector<1x256xf32>
    %42 = arith.divf %39, %41 : vector<1x256xf32>
    %43 = arith.fptosi %42 : vector<1x256xf32> to vector<1x256xi32>
    %44 = vector.broadcast %9 : i32 to vector<1x256xi32>
    %45 = arith.muli %43, %44 : vector<1x256xi32>
    %46 = arith.subi %36, %45 : vector<1x256xi32>
    %47 = arith.sitofp %33 : vector<1x256xi32> to vector<1x256xf32>
    %48 = arith.sitofp %43 : vector<1x256xi32> to vector<1x256xf32>
    %49 = arith.sitofp %46 : vector<1x256xi32> to vector<1x256xf32>
    %50 = vector.broadcast %12 : i32 to vector<1x256xi32>
    %51 = arith.cmpi slt, %26, %50 : vector<1x256xi32>
    %52 = arith.extui %51 : vector<1x256xi1> to vector<1x256xi32>
    %53 = arith.sitofp %52 : vector<1x256xi32> to vector<1x256xf32>
    %54 = vector.extract_strided_slice %23 {offsets = [0, 0], sizes = [9, 256], strides = [1, 1]} : vector<32x256xf32> to vector<9x256xf32>
    %55 = arith.negf %54 : vector<9x256xf32>
    %56 = math.exp %55 : vector<9x256xf32>
    %cst_9 = arith.constant 1.000000e+00 : f32
    %57 = vector.broadcast %cst_9 : f32 to vector<9x256xf32>
    %58 = arith.addf %57, %56 : vector<9x256xf32>
    %59 = arith.divf %57, %58 : vector<9x256xf32>
    %60 = vector.extract_strided_slice %59 {offsets = [0, 0], sizes = [3, 256], strides = [1, 1]} : vector<9x256xf32> to vector<3x256xf32>
    %61 = vector.extract_strided_slice %59 {offsets = [3, 0], sizes = [3, 256], strides = [1, 1]} : vector<9x256xf32> to vector<3x256xf32>
    %62 = vector.broadcast %49 : vector<1x256xf32> to vector<3x256xf32>
    %63 = arith.addf %62, %61 : vector<3x256xf32>
    %64 = arith.sitofp %15 : i32 to f32
    %65 = vector.broadcast %64 : f32 to vector<3x256xf32>
    %66 = arith.mulf %63, %65 : vector<3x256xf32>
    %cst_10 = arith.constant 5.000000e-01 : f32
    %67 = vector.broadcast %cst_10 : f32 to vector<3x256xf32>
    %68 = arith.mulf %66, %67 : vector<3x256xf32>
    %69 = vector.extract_strided_slice %59 {offsets = [6, 0], sizes = [3, 256], strides = [1, 1]} : vector<9x256xf32> to vector<3x256xf32>
    %70 = vector.broadcast %48 : vector<1x256xf32> to vector<3x256xf32>
    %71 = arith.addf %70, %69 : vector<3x256xf32>
    %72 = arith.sitofp %15 : i32 to f32
    %73 = vector.broadcast %72 : f32 to vector<3x256xf32>
    %74 = arith.mulf %71, %73 : vector<3x256xf32>
    %cst_11 = arith.constant 5.000000e-01 : f32
    %75 = vector.broadcast %cst_11 : f32 to vector<3x256xf32>
    %76 = arith.mulf %74, %75 : vector<3x256xf32>
    %77 = vector.extract_strided_slice %23 {offsets = [9, 0], sizes = [6, 256], strides = [1, 1]} : vector<32x256xf32> to vector<6x256xf32>
    %78 = math.exp %77 : vector<6x256xf32>
    %cst_12 = arith.constant 5.000000e-01 : f32
    %79 = vector.broadcast %cst_12 : f32 to vector<3x256xf32>
    %80 = arith.cmpf ogt, %60, %79 : vector<3x256xf32>
    %81 = arith.extui %80 : vector<3x256xi1> to vector<3x256xi32>
    %82 = arith.sitofp %81 : vector<3x256xi32> to vector<3x256xf32>
    %83 = vector.broadcast %53 : vector<1x256xf32> to vector<3x256xf32>
    %84 = arith.mulf %82, %83 : vector<3x256xf32>
    %85 = tpu.iota {dimensions = array<i32: 0>} : vector<5x256xi32>
    %86 = vector.extract_strided_slice %23 {offsets = [15, 0], sizes = [5, 256], strides = [1, 1]} : vector<32x256xf32> to vector<5x256xf32>
    %cst_13 = arith.constant dense<0xFF800000> : vector<256xf32>
    %87 = vector.multi_reduction <maximumf>, %86, %cst_13 [0] : vector<5x256xf32> to vector<256xf32>
    %88 = vector.shape_cast %87 : vector<256xf32> to vector<1x256xf32>
    %89 = vector.broadcast %88 : vector<1x256xf32> to vector<5x256xf32>
    %90 = arith.cmpf oge, %86, %89 : vector<5x256xf32>
    %c5_i32_14 = arith.constant 5 : i32
    %91 = vector.broadcast %c5_i32_14 : i32 to vector<5x256xi32>
    %92 = arith.select %90, %85, %91 : vector<5x256xi1>, vector<5x256xi32>
    %cst_15 = arith.constant dense<2147483647> : vector<256xi32>
    %93 = vector.multi_reduction <minsi>, %92, %cst_15 [0] : vector<5x256xi32> to vector<256xi32>
    %94 = vector.shape_cast %93 : vector<256xi32> to vector<1x256xi32>
    %95 = arith.sitofp %94 : vector<1x256xi32> to vector<1x256xf32>
    %96 = vector.extract_strided_slice %23 {offsets = [20, 0], sizes = [5, 256], strides = [1, 1]} : vector<32x256xf32> to vector<5x256xf32>
    %cst_16 = arith.constant dense<0xFF800000> : vector<256xf32>
    %97 = vector.multi_reduction <maximumf>, %96, %cst_16 [0] : vector<5x256xf32> to vector<256xf32>
    %98 = vector.shape_cast %97 : vector<256xf32> to vector<1x256xf32>
    %99 = vector.broadcast %98 : vector<1x256xf32> to vector<5x256xf32>
    %100 = arith.cmpf oge, %96, %99 : vector<5x256xf32>
    %c5_i32_17 = arith.constant 5 : i32
    %101 = vector.broadcast %c5_i32_17 : i32 to vector<5x256xi32>
    %102 = arith.select %100, %85, %101 : vector<5x256xi1>, vector<5x256xi32>
    %cst_18 = arith.constant dense<2147483647> : vector<256xi32>
    %103 = vector.multi_reduction <minsi>, %102, %cst_18 [0] : vector<5x256xi32> to vector<256xi32>
    %104 = vector.shape_cast %103 : vector<256xi32> to vector<1x256xi32>
    %105 = arith.sitofp %104 : vector<1x256xi32> to vector<1x256xf32>
    %106 = vector.extract_strided_slice %23 {offsets = [25, 0], sizes = [5, 256], strides = [1, 1]} : vector<32x256xf32> to vector<5x256xf32>
    %cst_19 = arith.constant dense<0xFF800000> : vector<256xf32>
    %107 = vector.multi_reduction <maximumf>, %106, %cst_19 [0] : vector<5x256xf32> to vector<256xf32>
    %108 = vector.shape_cast %107 : vector<256xf32> to vector<1x256xf32>
    %109 = vector.broadcast %108 : vector<1x256xf32> to vector<5x256xf32>
    %110 = arith.cmpf oge, %106, %109 : vector<5x256xf32>
    %c5_i32_20 = arith.constant 5 : i32
    %111 = vector.broadcast %c5_i32_20 : i32 to vector<5x256xi32>
    %112 = arith.select %110, %85, %111 : vector<5x256xi1>, vector<5x256xi32>
    %cst_21 = arith.constant dense<2147483647> : vector<256xi32>
    %113 = vector.multi_reduction <minsi>, %112, %cst_21 [0] : vector<5x256xi32> to vector<256xi32>
    %114 = vector.shape_cast %113 : vector<256xi32> to vector<1x256xi32>
    %115 = arith.sitofp %114 : vector<1x256xi32> to vector<1x256xf32>
    %116 = tpu.concatenate %95, %105, %115 in 0 : vector<1x256xf32>, vector<1x256xf32>, vector<1x256xf32> -> vector<3x256xf32>
    %cst_22 = arith.constant 0.000000e+00 : f32
    %117 = vector.broadcast %cst_22 : f32 to vector<2x256xf32>
    %118 = tpu.concatenate %47, %60, %68, %76, %78, %116, %84, %117 in 0 : vector<1x256xf32>, vector<3x256xf32>, vector<3x256xf32>, vector<3x256xf32>, vector<6x256xf32>, vector<3x256xf32>, vector<3x256xf32>, vector<2x256xf32> -> vector<24x256xf32>
    %c0_23 = arith.constant 0 : index
    %c0_24 = arith.constant 0 : index
    %119 = vector.load %arg5[%c0_23, %c0_24] : memref<24x256xf32, #tpu.memory_space<vmem>>, vector<24x256xf32>
    tpu.vector_store %arg5[%c0_23, %c0_24], %118 {strides = array<i32>} : memref<24x256xf32, #tpu.memory_space<vmem>>, vector<24x256xf32>,
    return
  }
  func.func @transform_0(%arg0: i32, %arg1: memref<24xi32, #tpu.memory_space<smem>>) -> (i32, i32) {
    %c0_i32 = arith.constant 0 : i32
    %c0_i32_0 = arith.constant 0 : i32
    return %c0_i32, %arg0 : i32, i32
  }
  func.func @transform_1(%arg0: i32, %arg1: memref<24xi32, #tpu.memory_space<smem>>) -> (i32, i32, i32) {
    %c6_i32 = arith.constant 6 : i32
    %0 = arith.muli %arg0, %c6_i32 : i32
    %c0_i32 = arith.constant 0 : i32
    %1 = arith.addi %0, %c0_i32 : i32
    %2 = arith.index_cast %1 : i32 to index
    %3 = memref.load %arg1[%2] : memref<24xi32, #tpu.memory_space<smem>>
    %c0_i32_0 = arith.constant 0 : i32
    %c0_i32_1 = arith.constant 0 : i32
    %c0_i32_2 = arith.constant 0 : i32
    return %3, %c0_i32_0, %c0_i32_1 : i32, i32, i32
  }
  func.func @transform_2(%arg0: i32, %arg1: memref<24xi32, #tpu.memory_space<smem>>) -> (i32, i32, i32) {
    %c6_i32 = arith.constant 6 : i32
    %0 = arith.muli %arg0, %c6_i32 : i32
    %c0_i32 = arith.constant 0 : i32
    %1 = arith.addi %0, %c0_i32 : i32
    %2 = arith.index_cast %1 : i32 to index
    %3 = memref.load %arg1[%2] : memref<24xi32, #tpu.memory_space<smem>>
    %c0_i32_0 = arith.constant 0 : i32
    %c0_i32_1 = arith.constant 0 : i32
    %c0_i32_2 = arith.constant 0 : i32
    return %3, %c0_i32_0, %c0_i32_1 : i32, i32, i32
  }
  func.func @transform_3(%arg0: i32, %arg1: memref<24xi32, #tpu.memory_space<smem>>) -> (i32, i32) {
    %c0_i32 = arith.constant 0 : i32
    %c0_i32_0 = arith.constant 0 : i32
    return %c0_i32, %arg0 : i32, i32
  }
}

</mosaic_0001>

<llo_original>
// kernel: _device_forward.1
$region0: #{_device_forward.1}
  #allocation0 [shape = 'u32[]', space=smem, size = 0x4, offset = 0x4, fixed_abs, tag = 'smem constant byte address 0x4 - core index']
  #allocation1 [shape = 'u32[144,128]{1,0:T(1,128)}', space=vmem, size = 0x12000, scoped, tag = 'internal scratch']
  #allocation2 [shape = 's32[1]{0}', space=sflag, size = 0x4, scoped, tag = 'scoped memory for _device_forward.1']
  #allocation3 [shape = 'u8[512]{0}', space=smem, size = 0x200, scoped, tag = 'prefetched SMEM operand 0']
  %s0 = inlined_call_operand.vmem [shape: s32[24], index: 0, kind: input, shape index: {}]
  %s1 = inlined_call_operand.vmem [shape: f32[4,1024], index: 1, kind: input, shape index: {}]
  %s2 = inlined_call_operand.vmem [shape: f32[3,32,4], index: 2, kind: input, shape index: {}]
  %s3 = inlined_call_operand.vmem [shape: f32[3,32,1], index: 3, kind: input, shape index: {}]
  %s4 = inlined_call_operand.vmem [shape: f32[24,1024], index: 4, kind: output, shape index: {}]
  %s5 = sld [smem:[#allocation0]]
  $region64: #{_device_forward.1} parent=0
    _
  %s7 = ssub.s32 1, %s5
  %s8 = scalar_select 0, %s7, %s5
  %s9 = sshll.u32 %s0, 4
  %s10 = int_to_ptr.vmem [resolvable:$true] %s9
  %12 = dma.vmem_to_smem %s10, 16, [#allocation3], [#allocation2]
  %13 = dma.done [#allocation2], 16
  %14 = sfence
  $region1: #{_device_forward.1} parent=0
    #allocation4 [shape = 'u8[49152]{0}', space=vmem, size = 0xc000, scoped, tag = 'output window, operand 0']
    loop: start=0, step=1, limit=6
    $region2: #{_device_forward.1} parent=1 // loop_pre_header
      _
    $region3: #{_device_forward.1} parent=1 // loop_header
      %s16 = sphi 0, %s20
      %p17 = scmp.ge.s32.totalorder %s16, 6
      %s26 = sphi 0, %s28
      %s29 = sphi 0, %s26
      %s30 = sphi 0, %s29
      %s46 = sphi 0, %s30
      %s56 = sphi 0, %s58
      %s59 = sphi 0, %s56
      %s60 = sphi 0, %s59
      %s76 = sphi 0, %s60
      %s86 = sphi 0, %s88
      %s89 = sphi 0, %s86
      %s90 = sphi 0, %s89
      %s106 = sphi 0, %s90
      %s112 = sphi 0, %s114
      %s115 = sphi 0, %s112
      %s116 = sphi 0, %s115
      %s132 = sphi 0, %s116
    $region4: #{_device_forward.1} parent=1 // loop_header_branch
      %19 = sbr.rel (%p17) target = $region8
    $region5: #{_device_forward.1} parent=1 // loop_body
      %s21 = ssub.s32 %s16, 1
      %s22 = ssub.s32 %s16, 2
      %s23 = sadd.s32 %s16, 1
      %s24 = ssub.s32 %s16, %s23
      %p25 = scmp.eq.s32.totalorder %s24, 0
      %s27 = sadd.s32 %s26, 1
      %s28 = scalar_select %p25, %s26, %s27
      %p31 = pneg %p25
      %p32 = scmp.eq.s32.totalorder %s16, 3
      %p33 = por %p31, %p32
      %p34 = scmp.ne.s32.totalorder %s26, %s29
      %p35 = scmp.eq.s32.totalorder %s16, 0
      %p36 = por %p34, %p35
      %p37 = scmp.ne.s32.totalorder %s26, %s29
      %p38 = scmp.eq.s32.totalorder %s21, 3
      %p39 = por %p37, %p38
      %p40 = scmp.ne.s32.totalorder %s29, %s30
      %p41 = scmp.eq.s32.totalorder %s21, 0
      %p42 = por %p40, %p41
      %p43 = scmp.ne.s32.totalorder %s29, %s30
      %p44 = scmp.eq.s32.totalorder %s22, 3
      %p45 = por %p43, %p44
      %p47 = scmp.ne.s32.totalorder %s30, %s46
      %p48 = scmp.eq.s32.totalorder %s22, 0
      %p49 = por %p47, %p48
      %s50 = smul.u32 %s16, 6
      %s51 = sld [smem:[#allocation3 + %s50]]
      %s52 = smul.u32 %s23, 6
      %s53 = sld [smem:[#allocation3 + %s52]]
      %s54 = ssub.s32 %s51, %s53
      %p55 = scmp.eq.s32.totalorder %s54, 0
      %s57 = sadd.s32 %s56, 1
      %s58 = scalar_select %p55, %s56, %s57
      %p61 = pneg %p55
      %p62 = scmp.eq.s32.totalorder %s16, 3
      %p63 = por %p61, %p62
      %p64 = scmp.ne.s32.totalorder %s56, %s59
      %p65 = scmp.eq.s32.totalorder %s16, 0
      %p66 = por %p64, %p65
      %p67 = scmp.ne.s32.totalorder %s56, %s59
      %p68 = scmp.eq.s32.totalorder %s21, 3
      %p69 = por %p67, %p68
      %p70 = scmp.ne.s32.totalorder %s59, %s60
      %p71 = scmp.eq.s32.totalorder %s21, 0
      %p72 = por %p70, %p71
      %p73 = scmp.ne.s32.totalorder %s59, %s60
      %p74 = scmp.eq.s32.totalorder %s22, 3
      %p75 = por %p73, %p74
      %p77 = scmp.ne.s32.totalorder %s60, %s76
      %p78 = scmp.eq.s32.totalorder %s22, 0
      %p79 = por %p77, %p78
      %s80 = smul.u32 %s16, 6
      %s81 = sld [smem:[#allocation3 + %s80]]
      %s82 = smul.u32 %s23, 6
      %s83 = sld [smem:[#allocation3 + %s82]]
      %s84 = ssub.s32 %s81, %s83
      %p85 = scmp.eq.s32.totalorder %s84, 0
      %s87 = sadd.s32 %s86, 1
      %s88 = scalar_select %p85, %s86, %s87
      %p91 = pneg %p85
      %p92 = scmp.eq.s32.totalorder %s16, 3
      %p93 = por %p91, %p92
      %p94 = scmp.ne.s32.totalorder %s86, %s89
      %p95 = scmp.eq.s32.totalorder %s16, 0
      %p96 = por %p94, %p95
      %p97 = scmp.ne.s32.totalorder %s86, %s89
      %p98 = scmp.eq.s32.totalorder %s21, 3
      %p99 = por %p97, %p98
      %p100 = scmp.ne.s32.totalorder %s89, %s90
      %p101 = scmp.eq.s32.totalorder %s21, 0
      %p102 = por %p100, %p101
      %p103 = scmp.ne.s32.totalorder %s89, %s90
      %p104 = scmp.eq.s32.totalorder %s22, 3
      %p105 = por %p103, %p104
      %p107 = scmp.ne.s32.totalorder %s90, %s106
      %p108 = scmp.eq.s32.totalorder %s22, 0
      %p109 = por %p107, %p108
      %s110 = ssub.s32 %s16, %s23
      %p111 = scmp.eq.s32.totalorder %s110, 0
      %s113 = sadd.s32 %s112, 1
      %s114 = scalar_select %p111, %s112, %s113
      %p117 = pneg %p111
      %p118 = scmp.eq.s32.totalorder %s16, 3
      %p119 = por %p117, %p118
      %p120 = scmp.ne.s32.totalorder %s112, %s115
      %p121 = scmp.eq.s32.totalorder %s16, 0
      %p122 = por %p120, %p121
      %p123 = scmp.ne.s32.totalorder %s112, %s115
      %p124 = scmp.eq.s32.totalorder %s21, 3
      %p125 = por %p123, %p124
      %p126 = scmp.ne.s32.totalorder %s115, %s116
      %p127 = scmp.eq.s32.totalorder %s21, 0
      %p128 = por %p126, %p127
      %p129 = scmp.ne.s32.totalorder %s115, %s116
      %p130 = scmp.eq.s32.totalorder %s22, 3
      %p131 = por %p129, %p130
      %p133 = scmp.ne.s32.totalorder %s116, %s132
      %p134 = scmp.eq.s32.totalorder %s22, 0
      %p135 = por %p133, %p134
      %p136 = scmp.le.s32.totalorder 1, %s16
      %p137 = scmp.lt.s32.totalorder %s16, 5
      %p138 = pnand %p136, %p137
      %p139 = pneg %p138
      // Predicated region
      $region9: #{_device_forward.1} parent=5 // pred_check
        _
      $region10: #{_device_forward.1} parent=5 // pred_check_branch
        %141 = sbr.rel (%p138) target = $region12
      $region11: #{_device_forward.1} parent=5 // pred_region
        %s142 = ssub.s32 %s16, 1
      $region12: #{_device_forward.1} parent=5 // pred_fallthru
        _
      %p143 = scmp.lt.s32.totalorder %s16, 4
      // Predicated region
      $region13: #{_device_forward.1} parent=5 // pred_check
        %p144 = pneg %p143
      $region14: #{_device_forward.1} parent=5 // pred_check_branch
        %146 = sbr.rel (%p144) target = $region16
      $region15: #{_device_forward.1} parent=5 // pred_region
        // Predicated region
        $region17: #{_device_forward.1} parent=15 // pred_check
          %p147 = pneg %p36
        $region18: #{_device_forward.1} parent=15 // pred_check_branch
          %149 = sbr.rel (%p147) target = $region20
        $region19: #{_device_forward.1} parent=15 // pred_region
          %s150 = smul.u32 2, %s16
          %p151 = scmp.lt.s32.totalorder %s150, 7
          %s152 = scalar_select %p151, %s150, 7
          %s153 = smul.addr %s152, 4
          %s154 = scalar_lea.vmem %s1, %s153
          %s155 = smul.u32 2, %s16
        $region20: #{_device_forward.1} parent=15 // pred_fallthru
          _
        // Predicated region
        $region21: #{_device_forward.1} parent=15 // pred_check
          %p156 = pneg %p66
        $region22: #{_device_forward.1} parent=15 // pred_check_branch
          %158 = sbr.rel (%p156) target = $region24
        $region23: #{_device_forward.1} parent=15 // pred_region
          %s159 = smul.u32 %s16, 6
          %s160 = sld [smem:[#allocation3 + %s159]]
          %p161 = scmp.lt.s32.totalorder %s160, 2
          %s162 = scalar_select %p161, %s160, 2
          %s163 = smul.addr %s162, 4
          %s164 = smul.addr %s163, 8
          %s165 = scalar_lea.vmem %s2, %s164
          %s166 = smul.u32 %s16, 6
          %s167 = sld [smem:[#allocation3 + %s166]]
        $region24: #{_device_forward.1} parent=15 // pred_fallthru
          _
        // Predicated region
        $region25: #{_device_forward.1} parent=15 // pred_check
          %p168 = pneg %p96
        $region26: #{_device_forward.1} parent=15 // pred_check_branch
          %170 = sbr.rel (%p168) target = $region28
        $region27: #{_device_forward.1} parent=15 // pred_region
          %s171 = smul.u32 %s16, 6
          %s172 = sld [smem:[#allocation3 + %s171]]
          %p173 = scmp.lt.s32.totalorder %s172, 2
          %s174 = scalar_select %p173, %s172, 2
          %s175 = smul.addr %s174, 4
          %s176 = smul.addr %s175, 8
          %s177 = scalar_lea.vmem %s3, %s176
          %s178 = smul.u32 %s16, 6
          %s179 = sld [smem:[#allocation3 + %s178]]
        $region28: #{_device_forward.1} parent=15 // pred_fallthru
          _
      $region16: #{_device_forward.1} parent=5 // pred_fallthru
        _
      %p180 = scmp.le.s32.totalorder 1, %s16
      %p181 = scmp.lt.s32.totalorder %s16, 5
      %p182 = pnand %p180, %p181
      %p183 = pneg %p182
      // Predicated region
      $region29: #{_device_forward.1} parent=5 // pred_check
        _
      $region30: #{_device_forward.1} parent=5 // pred_check_branch
        %185 = sbr.rel (%p182) target = $region32
      $region31: #{_device_forward.1} parent=5 // pred_region
        %s186 = ssub.s32 %s16, 1
        %s187 = smul.u32 2, %s21
        %p188 = scmp.lt.s32.totalorder %s187, 7
        %s189 = scalar_select %p188, %s187, 7
        %s190 = smul.addr %s189, 4
        %s191 = scalar_lea.vmem %s1, %s190
        %p192 = pneg %p42
        %p193 = pneg %p39
        %s194 = smul.u32 %s21, 6
        %s195 = sld [smem:[#allocation3 + %s194]]
        %p196 = scmp.lt.s32.totalorder %s195, 2
        %s197 = scalar_select %p196, %s195, 2
        %s198 = smul.addr %s197, 4
        %s199 = smul.addr %s198, 8
        %s200 = scalar_lea.vmem %s2, %s199
        %p201 = pneg %p72
        %p202 = pneg %p69
        %s203 = smul.u32 %s21, 6
        %s204 = sld [smem:[#allocation3 + %s203]]
        %p205 = scmp.lt.s32.totalorder %s204, 2
        %s206 = scalar_select %p205, %s204, 2
        %s207 = smul.addr %s206, 4
        %s208 = smul.addr %s207, 8
        %s209 = scalar_lea.vmem %s3, %s208
        %p210 = pneg %p102
        %p211 = pneg %p99
        %p212 = pneg %p128
        %p213 = pneg %p125
        %s214 = sand.u32 %s115, 1
        %s215 = sand.u32 %s115, 1
        %s216 = smul.addr %s215, 48
        %s217 = scalar_lea.vmem [#allocation4], %s216
        %s218 = smul.u32 2, %s21
        %p219 = scmp.lt.s32.totalorder %s218, 7
        %s220 = scalar_select %p219, %s218, 7
        %s221 = smul.addr %s220, 4
        %s222 = scalar_lea.vmem %s1, %s221
        %s223 = smul.u32 2, %s21
        %s224 = smul.u32 %s21, 6
        %s225 = sld [smem:[#allocation3 + %s224]]
        %p226 = scmp.lt.s32.totalorder %s225, 2
        %s227 = scalar_select %p226, %s225, 2
        %s228 = smul.addr %s227, 4
        %s229 = smul.addr %s228, 8
        %s230 = scalar_lea.vmem %s2, %s229
        %s231 = smul.u32 %s21, 6
        %s232 = sld [smem:[#allocation3 + %s231]]
        %s233 = smul.u32 %s21, 6
        %s234 = sld [smem:[#allocation3 + %s233]]
        %p235 = scmp.lt.s32.totalorder %s234, 2
        %s236 = scalar_select %p235, %s234, 2
        %s237 = smul.addr %s236, 4
        %s238 = smul.addr %s237, 8
        %s239 = scalar_lea.vmem %s3, %s238
        %s240 = smul.u32 %s21, 6
        %s241 = sld [smem:[#allocation3 + %s240]]
        %s242 = smul.u32 2, %s21
        %s243 = smul.u32 %s21, 6
        %s244 = sadd.s32 %s243, 1
        %s245 = sld [smem:[#allocation3 + %s244]]
        %s246 = sadd.s32 %s243, 2
        %s247 = sld [smem:[#allocation3 + %s246]]
        %s248 = sadd.s32 %s243, 3
        %s249 = sld [smem:[#allocation3 + %s248]]
        %s250 = sadd.s32 %s243, 4
        %s251 = sld [smem:[#allocation3 + %s250]]
        %s252 = sadd.s32 %s243, 5
        %s253 = sld [smem:[#allocation3 + %s252]]
        %v254 = vld [vmem:[%s222] sm:$0xff]
        %v255 = vld [vmem:[%s230] sm:$0xff]
        %v256 = vld [vmem:[%s230 + $0x8] sm:$0xff]
        %v257 = vld [vmem:[%s230 + $0x10] sm:$0xff]
        %v258 = vld [vmem:[%s230 + $0x18] sm:$0xff]
        %v259 = vld [vmem:[%s239] sm:$0xff]
        %v260 = vld [vmem:[%s239 + $0x8] sm:$0xff]
        %v261 = vld [vmem:[%s239 + $0x10] sm:$0xff]
        %v262 = vld [vmem:[%s239 + $0x18] sm:$0xff]
        %264 = vset.pattern.permute.xlu0 0
        %265 = vperm.xlu0 %264, %v259
        %v266 = vpop.permute.xlu0 %265
        %269 = vset.pattern.permute.xlu0 0
        %270 = vperm.xlu0 %269, %v260
        %v271 = vpop.permute.xlu0 %270
        %274 = vset.pattern.permute.xlu0 0
        %275 = vperm.xlu0 %274, %v261
        %v276 = vpop.permute.xlu0 %275
        %279 = vset.pattern.permute.xlu0 0
        %280 = vperm.xlu0 %279, %v262
        %v281 = vpop.permute.xlu0 %280
        %v284 = vcombine.high %v254, %v254
        %vm285 = vcmask 31744
        %v287 = vsel %vm285, %v255, 0
        %v290 = vsel %vm285, %v256, 0
        %v293 = vsel %vm285, %v257, 0
        %v296 = vsel %vm285, %v258, 0
        %vm298 = vcmask 1043456
        %v299 = vsel %vm298, %v254, 0
        %v301 = vsel %vm298, %v284, 0
        %303 = vmatprep.subr.mxu0 0.0
        %304 = vmatpush1.msra.mxu0 0.0
        %305 = vmatprep.subr.mxu0 0.0
        %306 = vmatpush1.msra.mxu0 0.0
        %307 = vmatprep.subr.mxu0 0.0
        %308 = vmatpush1.msra.mxu0 0.0
        %309 = vmatprep.subr.mxu0 0.0
        %310 = vmatpush1.msra.mxu0 0.0
        %311 = vmatprep.subr.mxu0 0.0
        %312 = vmatpush1.msra.mxu0 0.0
        %313 = vmatprep.subr.mxu0 0.0
        %314 = vmatpush1.msra.mxu0 0.0
        %315 = vmatprep.subr.mxu0 0.0
        %316 = vmatpush1.msra.mxu0 0.0
        %317 = vmatprep.subr.mxu0 0.0
        %318 = vmatpush1.msra.mxu0 0.0
        %319 = vmatprep.subr.mxu0 0.0
        %320 = vmatpush1.msra.mxu0 0.0
        %321 = vmatprep.subr.mxu0 0.0
        %322 = vmatpush1.msra.mxu0 0.0
        %323 = vmatprep.subr.mxu0 0.0
        %324 = vmatpush1.msra.mxu0 0.0
        %325 = vmatprep.subr.mxu0 0.0
        %326 = vmatpush1.msra.mxu0 0.0
        %327 = vmatprep.subr.mxu0 0.0
        %328 = vmatpush1.msra.mxu0 0.0
        %329 = vmatprep.subr.mxu0 0.0
        %330 = vmatpush1.msra.mxu0 0.0
        %331 = vmatprep.subr.mxu0 0.0
        %332 = vmatpush1.msra.mxu0 0.0
        %333 = vmatprep.subr.mxu0 %v301
        %334 = vmatpush1.msra.mxu0 %v299
        %335 = vmatprep.subr.mxu0 0.0
        %336 = vmatpush2.msra.mxu0 0.0
        %337 = vmatprep.subr.mxu0 0.0
        %338 = vmatpush2.msra.mxu0 0.0
        %339 = vmatprep.subr.mxu0 0.0
        %340 = vmatpush2.msra.mxu0 0.0
        %341 = vmatprep.subr.mxu0 0.0
        %342 = vmatpush2.msra.mxu0 0.0
        %343 = vmatprep.subr.mxu0 0.0
        %344 = vmatpush2.msra.mxu0 0.0
        %345 = vmatprep.subr.mxu0 0.0
        %346 = vmatpush2.msra.mxu0 0.0
        %347 = vmatprep.subr.mxu0 0.0
        %348 = vmatpush2.msra.mxu0 0.0
        %349 = vmatprep.subr.mxu0 0.0
        %350 = vmatpush2.msra.mxu0 0.0
        %351 = vmatprep.subr.mxu0 0.0
        %352 = vmatpush2.msra.mxu0 0.0
        %353 = vmatprep.subr.mxu0 0.0
        %354 = vmatpush2.msra.mxu0 0.0
        %355 = vmatprep.subr.mxu0 0.0
        %356 = vmatpush2.msra.mxu0 0.0
        %357 = vmatprep.subr.mxu0 0.0
        %358 = vmatpush2.msra.mxu0 0.0
        %359 = vmatprep.subr.mxu0 0.0
        %360 = vmatpush2.msra.mxu0 0.0
        %361 = vmatprep.subr.mxu0 0.0
        %362 = vmatpush2.msra.mxu0 0.0
        %363 = vmatprep.subr.mxu0 0.0
        %364 = vmatpush2.msra.mxu0 0.0
        %365 = vmatprep.subr.mxu0 0.0
        %366 = vmatpush2.msra.mxu0 0.0
        %367 = vmatprep.mubr.f32.mxu0 0.0
        %368 = vmatmul.mubr.f32.gmra.mxu0 %v287
        %v369 = vpop.f32.mrf.mxu0
        %v370 = vadd.f32 %v266, %v369
        %v371 = vpop.f32.mrf.mxu0
        %v372 = vadd.f32 %v266, %v371
        %373 = vmatprep.mubr.f32.mxu0 0.0
        %374 = vmatmul.mubr.f32.gmra.mxu0 %v290
        %v375 = vpop.f32.mrf.mxu0
        %v376 = vadd.f32 %v271, %v375
        %v377 = vpop.f32.mrf.mxu0
        %v378 = vadd.f32 %v271, %v377
        %379 = vmatprep.mubr.f32.mxu0 0.0
        %380 = vmatmul.mubr.f32.gmra.mxu0 %v293
        %v381 = vpop.f32.mrf.mxu0
        %v382 = vadd.f32 %v276, %v381
        %v383 = vpop.f32.mrf.mxu0
        %v384 = vadd.f32 %v276, %v383
        %385 = vmatprep.mubr.f32.mxu0 0.0
        %386 = vmatmul.mubr.f32.gmra.mxu0 %v296
        %v387 = vpop.f32.mrf.mxu0
        %v388 = vadd.f32 %v281, %v387
        %v389 = vpop.f32.mrf.mxu0
        %v390 = vadd.f32 %v281, %v389
        %391 = vdwg.mxu0
        %v392 = vlaneseq
        %v393 = vand.u32 %v392, 127
        %v394 = vadd.s32 %v393, 128
        %v395 = vstv %s245
        %v396 = vadd.s32 %v395, %v393
        %v397 = vadd.s32 %v395, %v394
        %v398 = vcvt.s32.f32 %v396
        %v399 = vcvt.s32.f32 %v397
        %v400 = vadd.f32 %v398, 0.5
        %v401 = vadd.f32 %v399, 0.5
        %s402 = scvt.s32.f32 %s247
        %v403 = vstv %s402
        %v404 = vrcp.pop %v403
        %v405 = vmul.f32 %v400, %v404
        %v406 = vmul.f32 %v401, %v404
        %v407 = vcvt.f32.s32.to.zero.pseudo %v405
        %v408 = vcvt.f32.s32.to.zero.pseudo %v406
        %v409 = vstv %s247
        %v410 = vmul.u32 %v407, %v409
        %v411 = vmul.u32 %v408, %v409
        %v412 = vsub.s32 %v396, %v410
        %v413 = vsub.s32 %v397, %v411
        %v414 = vcvt.s32.f32 %v412
        %v415 = vcvt.s32.f32 %v413
        %v416 = vadd.f32 %v414, 0.5
        %v417 = vadd.f32 %v415, 0.5
        %s418 = scvt.s32.f32 %s249
        %v419 = vstv %s418
        %v420 = vrcp.pop %v419
        %v421 = vmul.f32 %v416, %v420
        %v422 = vmul.f32 %v417, %v420
        %v423 = vcvt.f32.s32.to.zero.pseudo %v421
        %v424 = vcvt.f32.s32.to.zero.pseudo %v422
        %v425 = vstv %s249
        %v426 = vmul.u32 %v423, %v425
        %v427 = vmul.u32 %v424, %v425
        %v428 = vsub.s32 %v412, %v426
        %v429 = vsub.s32 %v413, %v427
        %v430 = vcvt.s32.f32 %v407
        %v431 = vcvt.s32.f32 %v408
        %v432 = vcvt.s32.f32 %v423
        %v433 = vcvt.s32.f32 %v424
        %v434 = vcvt.s32.f32 %v428
        %v435 = vcvt.s32.f32 %v429
        %v436 = vstv %s251
        %vm437 = vcmp.lt.s32.totalorder %v396, %v436
        %vm438 = vcmp.lt.s32.totalorder %v397, %v436
        %v439 = vsel %vm437, 1, 0
        %v440 = vsel %vm438, 1, 0
        %v441 = vcvt.s32.f32 %v439
        %v442 = vcvt.s32.f32 %v440
        %v443 = vxor.u32 %v370, 2147483648
        %v444 = vxor.u32 %v372, 2147483648
        %v445 = vxor.u32 %v376, 2147483648
        %v446 = vxor.u32 %v378, 2147483648
        %v447 = vmul.f32 %v443, 1.442695
        %v448 = vpow.pop %v447
        %v449 = vmul.f32 %v444, 1.442695
        %v450 = vpow.pop %v449
        %v451 = vmul.f32 %v445, 1.442695
        %v452 = vpow.pop %v451
        %v453 = vmul.f32 %v446, 1.442695
        %v454 = vpow.pop %v453
        %v455 = vadd.f32 %v448, 1.0
        %v456 = vadd.f32 %v450, 1.0
        %v457 = vadd.f32 %v452, 1.0
        %v458 = vadd.f32 %v454, 1.0
        %v459 = vrcp.pop %v455
        %v460 = vmul.f32 1.0, %v459
        %v461 = vrcp.pop %v456
        %v462 = vmul.f32 1.0, %v461
        %v463 = vrcp.pop %v457
        %v464 = vmul.f32 1.0, %v463
        %v465 = vrcp.pop %v458
        %v466 = vmul.f32 1.0, %v465
        %v467 = vadd.f32 %v434, %v460
        %v468 = vadd.f32 %v435, %v462
        %s469 = scvt.s32.f32 %s253
        %v470 = vstv %s469
        %v471 = vmul.f32 %v467, %v470
        %v472 = vmul.f32 %v468, %v470
        %v473 = vmul.f32 %v471, 0.5
        %v474 = vmul.f32 %v472, 0.5
        %v475 = vadd.f32 %v432, %v460
        %v476 = vadd.f32 %v433, %v462
        %v477 = vadd.f32 %v432, %v464
        %v478 = vadd.f32 %v433, %v466
        %v479 = vmul.f32 %v475, %v470
        %v480 = vmul.f32 %v476, %v470
        %v481 = vmul.f32 %v477, %v470
        %v482 = vmul.f32 %v478, %v470
        %v483 = vmul.f32 %v479, 0.5
        %v484 = vmul.f32 %v480, 0.5
        %v485 = vmul.f32 %v481, 0.5
        %v486 = vmul.f32 %v482, 0.5
        %v487 = vmul.f32 %v376, 1.442695
        %v488 = vpow.pop %v487
        %v489 = vmul.f32 %v378, 1.442695
        %v490 = vpow.pop %v489
        %vm491 = vcmp.gt.f32.partialorder %v460, 0.5
        %vm492 = vcmp.gt.f32.partialorder %v462, 0.5
        %v493 = vsel %vm491, 1, 0
        %v494 = vsel %vm492, 1, 0
        %v495 = vcvt.s32.f32 %v493
        %v496 = vcvt.s32.f32 %v494
        %v497 = vmul.f32 %v495, %v441
        %v498 = vmul.f32 %v496, %v442
        %v499 = vlaneseq
        %v500 = vshrl.u32 %v499, 7
        %vm501 = vcmask 1047559
        %v502 = vsel %vm501, %v376, -inf
        %v503 = vsel %vm298, %v382, -inf
        %v504 = vmax.f32 %v502, %v503
        %v505 = vrot.slane %v504, 4
        %v506 = vmax.f32 %v504, %v505
        %v507 = vrot.slane %v506, 2
        %v508 = vmax.f32 %v506, %v507
        %v509 = vrot.slane %v508, 1
        %v510 = vmax.f32 %v508, %v509
        %v511 = vsel %vm501, %v378, -inf
        %v512 = vsel %vm298, %v384, -inf
        %v513 = vmax.f32 %v511, %v512
        %v514 = vrot.slane %v513, 4
        %v515 = vmax.f32 %v513, %v514
        %v516 = vrot.slane %v515, 2
        %v517 = vmax.f32 %v515, %v516
        %v518 = vrot.slane %v517, 1
        %v519 = vmax.f32 %v517, %v518
        %vm520 = vcmp.ge.f32.partialorder %v376, %v510
        %vm521 = vcmp.ge.f32.partialorder %v378, %v519
        %vm522 = vcmp.ge.f32.partialorder %v382, %v510
        %vm523 = vcmp.ge.f32.partialorder %v384, %v519
        %v524 = vrot.slane %v500, 1
        %v525 = vsel %vm520, %v524, 5
        %v526 = vsel %vm521, %v524, 5
        %v527 = vsel %vm522, %v524, 5
        %v528 = vsel %vm523, %v524, 5
        %v529 = vsel %vm501, %v525, 2147483647
        %v530 = vsel %vm298, %v527, 2147483647
        %vm531 = vcmp.lt.s32.totalorder %v529, %v530
        %v532 = vsel %vm531, %v529, %v530
        %v533 = vrot.slane %v532, 4
        %vm534 = vcmp.lt.s32.totalorder %v532, %v533
        %v535 = vsel %vm534, %v532, %v533
        %v536 = vrot.slane %v535, 2
        %vm537 = vcmp.lt.s32.totalorder %v535, %v536
        %v538 = vsel %vm537, %v535, %v536
        %v539 = vrot.slane %v538, 1
        %vm540 = vcmp.lt.s32.totalorder %v538, %v539
        %v541 = vsel %vm540, %v538, %v539
        %v542 = vsel %vm501, %v526, 2147483647
        %v543 = vsel %vm298, %v528, 2147483647
        %vm544 = vcmp.lt.s32.totalorder %v542, %v543
        %v545 = vsel %vm544, %v542, %v543
        %v546 = vrot.slane %v545, 4
        %vm547 = vcmp.lt.s32.totalorder %v545, %v546
        %v548 = vsel %vm547, %v545, %v546
        %v549 = vrot.slane %v548, 2
        %vm550 = vcmp.lt.s32.totalorder %v548, %v549
        %v551 = vsel %vm550, %v548, %v549
        %v552 = vrot.slane %v551, 1
        %vm553 = vcmp.lt.s32.totalorder %v551, %v552
        %v554 = vsel %vm553, %v551, %v552
        %v555 = vcvt.s32.f32 %v541
        %v556 = vcvt.s32.f32 %v554
        %vm557 = vcmask 1047556
        %v558 = vsel %vm557, %v382, -inf
        %vm559 = vcmask 1040384
        %v560 = vsel %vm559, %v388, -inf
        %v561 = vmax.f32 %v558, %v560
        %v562 = vrot.slane %v561, 4
        %v563 = vmax.f32 %v561, %v562
        %v564 = vrot.slane %v563, 2
        %v565 = vmax.f32 %v563, %v564
        %v566 = vrot.slane %v565, 1
        %v567 = vmax.f32 %v565, %v566
        %v568 = vsel %vm557, %v384, -inf
        %v569 = vsel %vm559, %v390, -inf
        %v570 = vmax.f32 %v568, %v569
        %v571 = vrot.slane %v570, 4
        %v572 = vmax.f32 %v570, %v571
        %v573 = vrot.slane %v572, 2
        %v574 = vmax.f32 %v572, %v573
        %v575 = vrot.slane %v574, 1
        %v576 = vmax.f32 %v574, %v575
        %vm577 = vcmp.ge.f32.partialorder %v382, %v567
        %vm578 = vcmp.ge.f32.partialorder %v384, %v576
        %vm579 = vcmp.ge.f32.partialorder %v388, %v567
        %vm580 = vcmp.ge.f32.partialorder %v390, %v576
        %v581 = vrot.slane %v500, 4
        %v582 = vsel %vm577, %v581, 5
        %v583 = vsel %vm578, %v581, 5
        %v584 = vsel %vm579, %v581, 5
        %v585 = vsel %vm580, %v581, 5
        %v586 = vsel %vm557, %v582, 2147483647
        %v587 = vsel %vm559, %v584, 2147483647
        %vm588 = vcmp.lt.s32.totalorder %v586, %v587
        %v589 = vsel %vm588, %v586, %v587
        %v590 = vrot.slane %v589, 4
        %vm591 = vcmp.lt.s32.totalorder %v589, %v590
        %v592 = vsel %vm591, %v589, %v590
        %v593 = vrot.slane %v592, 2
        %vm594 = vcmp.lt.s32.totalorder %v592, %v593
        %v595 = vsel %vm594, %v592, %v593
        %v596 = vrot.slane %v595, 1
        %vm597 = vcmp.lt.s32.totalorder %v595, %v596
        %v598 = vsel %vm597, %v595, %v596
        %v599 = vsel %vm557, %v583, 2147483647
        %v600 = vsel %vm559, %v585, 2147483647
        %vm601 = vcmp.lt.s32.totalorder %v599, %v600
        %v602 = vsel %vm601, %v599, %v600
        %v603 = vrot.slane %v602, 4
        %vm604 = vcmp.lt.s32.totalorder %v602, %v603
        %v605 = vsel %vm604, %v602, %v603
        %v606 = vrot.slane %v605, 2
        %vm607 = vcmp.lt.s32.totalorder %v605, %v606
        %v608 = vsel %vm607, %v605, %v606
        %v609 = vrot.slane %v608, 1
        %vm610 = vcmp.lt.s32.totalorder %v608, %v609
        %v611 = vsel %vm610, %v608, %v609
        %v612 = vcvt.s32.f32 %v598
        %v613 = vcvt.s32.f32 %v611
        %vm614 = vcmask 1045505
        %v615 = vsel %vm614, %v388, -inf
        %v616 = vrot.slane %v615, 4
        %v617 = vmax.f32 %v615, %v616
        %v618 = vrot.slane %v617, 2
        %v619 = vmax.f32 %v617, %v618
        %v620 = vrot.slane %v619, 1
        %v621 = vmax.f32 %v619, %v620
        %v622 = vsel %vm614, %v390, -inf
        %v623 = vrot.slane %v622, 4
        %v624 = vmax.f32 %v622, %v623
        %v625 = vrot.slane %v624, 2
        %v626 = vmax.f32 %v624, %v625
        %v627 = vrot.slane %v626, 1
        %v628 = vmax.f32 %v626, %v627
        %vm629 = vcmp.ge.f32.partialorder %v388, %v621
        %vm630 = vcmp.ge.f32.partialorder %v390, %v628
        %v631 = vrot.slane %v500, 7
        %v632 = vsel %vm629, %v631, 5
        %v633 = vsel %vm630, %v631, 5
        %v634 = vsel %vm614, %v632, 2147483647
        %v635 = vrot.slane %v634, 4
        %vm636 = vcmp.lt.s32.totalorder %v634, %v635
        %v637 = vsel %vm636, %v634, %v635
        %v638 = vrot.slane %v637, 2
        %vm639 = vcmp.lt.s32.totalorder %v637, %v638
        %v640 = vsel %vm639, %v637, %v638
        %v641 = vrot.slane %v640, 1
        %vm642 = vcmp.lt.s32.totalorder %v640, %v641
        %v643 = vsel %vm642, %v640, %v641
        %v644 = vsel %vm614, %v633, 2147483647
        %v645 = vrot.slane %v644, 4
        %vm646 = vcmp.lt.s32.totalorder %v644, %v645
        %v647 = vsel %vm646, %v644, %v645
        %v648 = vrot.slane %v647, 2
        %vm649 = vcmp.lt.s32.totalorder %v647, %v648
        %v650 = vsel %vm649, %v647, %v648
        %v651 = vrot.slane %v650, 1
        %vm652 = vcmp.lt.s32.totalorder %v650, %v651
        %v653 = vsel %vm652, %v650, %v651
        %v654 = vcvt.s32.f32 %v643
        %v655 = vcvt.s32.f32 %v653
        %v656 = vsel %vm559, %v555, %v612
        %v657 = vsel %vm559, %v556, %v613
        %vm658 = vcmask 1041408
        %v659 = vsel %vm658, %v656, %v654
        %v660 = vsel %vm658, %v657, %v655
        %v663 = vrot.slane %v460, 7
        %v664 = vrot.slane %v462, 7
        %v669 = vrot.slane %v473, 7
        %v670 = vrot.slane %v474, 7
        %v677 = vrot.slane %v483, 7
        %v678 = vrot.slane %v484, 7
        %v679 = vrot.slane %v485, 7
        %v680 = vsel %vm559, %v677, %v679
        %v681 = vrot.slane %v486, 7
        %v682 = vsel %vm559, %v678, %v681
        %v689 = vrot.slane %v488, 7
        %v690 = vrot.slane %v490, 7
        %v695 = vrot.slane %v497, 5
        %v696 = vrot.slane %v498, 5
        %v699 = vsel %vm559, %v430, %v663
        %v700 = vsel %vm559, %v431, %v664
        %v701 = vsel %vm298, %v699, %v669
        %v702 = vsel %vm298, %v700, %v670
        %vm703 = vcmask 1046528
        %v704 = vsel %vm703, %v701, %v677
        %v705 = vsel %vm703, %v702, %v678
        %v706 = vsel %vm658, %v680, %v689
        %v707 = vsel %vm658, %v682, %v690
        %vm708 = vcmask 1042432
        %v709 = vsel %vm708, %v659, %v695
        %v710 = vsel %vm708, %v660, %v696
        %vm711 = vcmask 1045504
        %v712 = vsel %vm711, %v709, 0.0
        %v713 = vsel %vm711, %v710, 0.0
        %714 = vst [vmem:[%s217] sm:$0xff] %v704
        %715 = vst [vmem:[%s217 + $0x8] sm:$0xff] %v705
        %716 = vst [vmem:[%s217 + $0x10] sm:$0xff] %v706
        %717 = vst [vmem:[%s217 + $0x18] sm:$0xff] %v707
        %718 = vst [vmem:[%s217 + $0x20] sm:$0xff] %v712
        %719 = vst [vmem:[%s217 + $0x28] sm:$0xff] %v713
        %s720 = sand.u32 %s115, 1
        %s721 = sand.u32 %s115, 1
        %s722 = smul.addr %s721, 48
        %s723 = scalar_lea.vmem [#allocation4], %s722
        // Predicated region
        $region33: #{_device_forward.1} parent=31 // pred_check
          %p724 = pneg %p125
        $region34: #{_device_forward.1} parent=31 // pred_check_branch
          %726 = sbr.rel (%p724) target = $region36
        $region35: #{_device_forward.1} parent=31 // pred_region
          %s727 = smul.u32 2, %s21
          %s728 = smul.addr %s727, 8
          %s729 = scalar_lea.vmem %s4, %s728
          // Predicated region
          $region37: #{_device_forward.1} parent=35 // pred_check
            _
          $region38: #{_device_forward.1} parent=35 // pred_check_branch
            %731 = sbr.rel (0) target = $region40
          $region39: #{_device_forward.1} parent=35 // pred_region
            // Predicated region
            $region41: #{_device_forward.1} parent=39 // pred_check
              _
            $region42: #{_device_forward.1} parent=39 // pred_check_branch
              %733 = sbr.rel (0) target = $region44
            $region43: #{_device_forward.1} parent=39 // pred_region
              loop: start=0, step=1, limit=1
              $region45: #{_device_forward.1} parent=43 // loop_pre_header
                _
              $region46: #{_device_forward.1} parent=43 // loop_header
                %s735 = sphi 0, %s739
                %p736 = scmp.ge.s32.totalorder %s735, 1
                %s740 = sphi %s723, %s723
                %s741 = sphi %s729, %s729
              $region47: #{_device_forward.1} parent=43 // loop_header_branch
                %738 = sbr.rel (%p736) target = $region51
              $region48: #{_device_forward.1} parent=43 // loop_body
                %v742 = vld [vmem:[%s740] sm:$0xff]
                %743 = vst [vmem:[%s741] sm:$0xff] %v742
                %v744 = vld [vmem:[%s740 + $0x8] sm:$0xff]
                %745 = vst [vmem:[%s741 + $0x8] sm:$0xff] %v744
                %v746 = vld [vmem:[%s740 + $0x10] sm:$0xff]
                %747 = vst [vmem:[%s741 + $0x40] sm:$0xff] %v746
                %v748 = vld [vmem:[%s740 + $0x18] sm:$0xff]
                %749 = vst [vmem:[%s741 + $0x48] sm:$0xff] %v748
                %v750 = vld [vmem:[%s740 + $0x20] sm:$0xff]
                %751 = vst [vmem:[%s741 + $0x80] sm:$0xff] %v750
                %v752 = vld [vmem:[%s740 + $0x28] sm:$0xff]
                %753 = vst [vmem:[%s741 + $0x88] sm:$0xff] %v752
              $region49: #{_device_forward.1} parent=43 // loop_footer
                %s739 = sadd.s32 1, %s735
              $region50: #{_device_forward.1} parent=43 // loop_footer_branch
                %734 = sbr.rel target = $region46
              $region51: #{_device_forward.1} parent=43 // loop_exit
                _
            $region44: #{_device_forward.1} parent=39 // pred_fallthru
              _
            // Predicated region
            $region52: #{_device_forward.1} parent=39 // pred_check
              _
            $region53: #{_device_forward.1} parent=39 // pred_check_branch
              %755 = sbr.rel target = $region55
            $region54: #{_device_forward.1} parent=39 // pred_region
              _
            $region55: #{_device_forward.1} parent=39 // pred_fallthru
              _
          $region40: #{_device_forward.1} parent=35 // pred_fallthru
            _
          %756 = vnop
        $region36: #{_device_forward.1} parent=31 // pred_fallthru
          _
      $region32: #{_device_forward.1} parent=5 // pred_fallthru
        _
      %p757 = scmp.le.s32.totalorder 2, %s16
      // Predicated region
      $region56: #{_device_forward.1} parent=5 // pred_check
        %p758 = pneg %p757
      $region57: #{_device_forward.1} parent=5 // pred_check_branch
        %760 = sbr.rel (%p758) target = $region59
      $region58: #{_device_forward.1} parent=5 // pred_region
        %s761 = ssub.s32 %s16, 2
        // Predicated region
        $region60: #{_device_forward.1} parent=58 // pred_check
          %p762 = pneg %p131
        $region61: #{_device_forward.1} parent=58 // pred_check_branch
          %764 = sbr.rel (%p762) target = $region63
        $region62: #{_device_forward.1} parent=58 // pred_region
          %s765 = sand.u32 %s116, 1
          %s766 = sand.u32 %s116, 1
          %s767 = smul.addr %s766, 48
          %s768 = scalar_lea.vmem [#allocation4], %s767
        $region63: #{_device_forward.1} parent=58 // pred_fallthru
          _
      $region59: #{_device_forward.1} parent=5 // pred_fallthru
        _
    $region6: #{_device_forward.1} parent=1 // loop_footer
      %s20 = sadd.s32 1, %s16
    $region7: #{_device_forward.1} parent=1 // loop_footer_branch
      %15 = sbr.rel target = $region3
    $region8: #{_device_forward.1} parent=1 // loop_exit
      _

</llo_original>
